<compile_context>
chip_gen: v5e
topology: v5e:2x2
jax: 0.10.0
libtpu: 0.0.40
codegen_flags: <defaults>
</compile_context>

<pallas_src>
import jax
import jax.numpy as jnp
from jax.experimental import pallas as pl
from jax.experimental.pallas import tpu as pltpu


def _conv_gemm_kernel(w_ref, p_ref, o_ref):
    """Pure GEMM: (Cout, K) @ (K, M) -> (Cout, M), with M = OH*OW.

    w_ref: (Cout, K)     VMEM, same block every grid step (stays resident)
    p_ref: (1, K, M)     VMEM, im2col patches for this batch element
    o_ref: (1, Cout, M)  VMEM, output in NCHW-flattened layout (lane dense)
    """
    o_ref[0] = jnp.dot(
        w_ref[...], p_ref[0], preferred_element_type=jnp.float32
    ).astype(o_ref.dtype)


def conv2d_pallas(x_nchw, w_oihw):
    """Standard 2D conv: stride=(1,1), padding=(0,0), dilation=(1,1), groups=1, no bias.

    x_nchw: (N, Cin, H, W)      float32
    w_oihw: (Cout, Cin, KH, KW) float32
    returns (N, Cout, OH, OW)   float32
    """
    N, Cin, H, W = x_nchw.shape
    Cout, _, KH, KW = w_oihw.shape
    OH = H - KH + 1
    OW = W - KW + 1
    K = Cin * KH * KW
    M = OH * OW

    # im2col in the wrapper. Row ordering (c, kh, kw) matches the free-view
    # weight reshape below: patches[n, c*KH*KW + kh*KW + kw, oh*OW + ow]
    #                        = x[n, c, oh + kh, ow + kw].
    cols = []
    for c in range(Cin):
        for kh in range(KH):
            for kw in range(KW):
                cols.append(x_nchw[:, c, kh:kh + OH, kw:kw + OW].reshape(N, M))
    patches = jnp.stack(cols, axis=1)            # (N, K, M)

    w2d = w_oihw.reshape(Cout, K)                # (Cout, K), free view

    out_flat = pl.pallas_call(
        _conv_gemm_kernel,
        out_shape=jax.ShapeDtypeStruct((N, Cout, M), x_nchw.dtype),
        grid_spec=pltpu.PrefetchScalarGridSpec(
            num_scalar_prefetch=0,
            grid=(N,),
            in_specs=[
                pl.BlockSpec((Cout, K), lambda n: (0, 0)),       # weights: resident
                pl.BlockSpec((1, K, M), lambda n: (n, 0, 0)),    # patches: per image
            ],
            out_specs=pl.BlockSpec((1, Cout, M), lambda n: (n, 0, 0)),
        ),
        compiler_params=pltpu.CompilerParams(
            dimension_semantics=("parallel",),
        ),
    )(w2d, patches)

    # Free view back to the PyTorch NCHW output shape (no transpose needed).
    return out_flat.reshape(N, Cout, OH, OW)


if __name__ == "__main__":
    # Module constants from the PyTorch script.
    in_channels = 3
    out_channels = 64
    kernel_size = (3, 5)

    # Small asymmetric input.
    batch, H, W = 2, 16, 32

    key = jax.random.PRNGKey(0)
    kx, kw = jax.random.split(key)
    x = jax.random.normal(kx, (batch, in_channels, H, W), dtype=jnp.float32)
    # Deterministic weight init (nn.Conv2d-style scale, uniform).
    fan_in = in_channels * kernel_size[0] * kernel_size[1]
    bound = 1.0 / (fan_in ** 0.5)
    weight = jax.random.uniform(
        kw, (out_channels, in_channels, kernel_size[0], kernel_size[1]),
        dtype=jnp.float32, minval=-bound, maxval=bound)

    conv2d = jax.jit(conv2d_pallas)
    out = conv2d(x, weight)
    out = jax.block_until_ready(out)

    # Sanity check against XLA's conv (same semantics as nn.Conv2d with
    # stride=1, padding=0, dilation=1, groups=1, bias=False).
    ref = jax.lax.conv_general_dilated(
        x, weight, window_strides=(1, 1), padding="VALID",
        dimension_numbers=("NCHW", "OIHW", "NCHW"))
    assert out.shape == ref.shape
    assert jnp.max(jnp.abs(out - ref)) < 1e-4

    print("KERNEL_OK")
</pallas_src>

<mosaic_0001>
module attributes {stable_mosaic.version = 11 : i64} {
  func.func @_conv_gemm_kernel(%arg0: i32, %arg1: memref<64x45xf32, #tpu.memory_space<vmem>>, %arg2: memref<1x45x392xf32, #tpu.memory_space<vmem>>, %arg3: memref<1x64x392xf32, #tpu.memory_space<vmem>>) attributes {dimension_semantics = [#tpu.dimension_semantics<parallel>], iteration_bounds = array<i64: 2>, scalar_prefetch = 0 : i64, scratch_operands = 0 : i64, tpu.core_type = #tpu.core_type<tc>, window_params = [{pipeline_mode = #tpu.pipeline_mode<synchronous>, transform_indices = @transform_0, window_bounds = array<i64: 64, 45>}, {transform_indices = @transform_1, window_bounds = array<i64: 1, 45, 392>}, {transform_indices = @transform_2, window_bounds = array<i64: 1, 64, 392>}]} {
    %c0 = arith.constant 0 : index
    %c0_0 = arith.constant 0 : index
    %0 = vector.load %arg1[%c0, %c0_0] : memref<64x45xf32, #tpu.memory_space<vmem>>, vector<64x45xf32>
    %c0_1 = arith.constant 0 : index
    %c0_2 = arith.constant 0 : index
    %c0_3 = arith.constant 0 : index
    %1 = vector.load %arg2[%c0_1, %c0_2, %c0_3] : memref<1x45x392xf32, #tpu.memory_space<vmem>>, vector<1x45x392xf32>
    %2 = vector.shape_cast %1 : vector<1x45x392xf32> to vector<45x392xf32>
    %cst = arith.constant dense<0.000000e+00> : vector<64x392xf32>
    %3 = tpu.matmul %0, %2, %cst {dimension_numbers = #tpu.dot_dimension_numbers<[1], [0], [0], [1], [0, 0, 1, 1], [], []>} : vector<64x45xf32>, vector<45x392xf32>, vector<64x392xf32> -> vector<64x392xf32>
    %c0_4 = arith.constant 0 : index
    %c0_5 = arith.constant 0 : index
    %c0_6 = arith.constant 0 : index
    %4 = vector.load %arg3[%c0_4, %c0_5, %c0_6] : memref<1x64x392xf32, #tpu.memory_space<vmem>>, vector<1x64x392xf32>
    %5 = vector.shape_cast %4 : vector<1x64x392xf32> to vector<64x392xf32>
    %6 = vector.shape_cast %3 : vector<64x392xf32> to vector<1x64x392xf32>
    tpu.vector_store %arg3[%c0_4, %c0_5, %c0_6], %6 {strides = array<i32>} : memref<1x64x392xf32, #tpu.memory_space<vmem>>, vector<1x64x392xf32>,
    return
  }
  func.func @transform_0(%arg0: i32) -> (i32, i32) {
    %c0_i32 = arith.constant 0 : i32
    %c0_i32_0 = arith.constant 0 : i32
    %c0_i32_1 = arith.constant 0 : i32
    return %c0_i32, %c0_i32_0 : i32, i32
  }
  func.func @transform_1(%arg0: i32) -> (i32, i32, i32) {
    %c0_i32 = arith.constant 0 : i32
    %c0_i32_0 = arith.constant 0 : i32
    %c0_i32_1 = arith.constant 0 : i32
    return %arg0, %c0_i32, %c0_i32_0 : i32, i32, i32
  }
  func.func @transform_2(%arg0: i32) -> (i32, i32, i32) {
    %c0_i32 = arith.constant 0 : i32
    %c0_i32_0 = arith.constant 0 : i32
    %c0_i32_1 = arith.constant 0 : i32
    return %arg0, %c0_i32, %c0_i32_0 : i32, i32, i32
  }
}

</mosaic_0001>

<llo_original>
// kernel: squeeze.51
$region0: #{squeeze.51}
  %s0 = inlined_call_operand.vmem [shape: f32[2,1,14,28], index: 0, kind: input, shape index: {}]
  %s1 = inlined_call_operand.vmem [shape: f32[2,1,392], index: 1, kind: output, shape index: {}]
  $region1: #{squeeze.51} parent=0
    #allocation0 [shape = 'u8[32768]{0}', space=vmem, size = 0x8000, scoped, tag = 'scoped mem for output reshape']
    %s2 = smov 3
    %v3 = vld [vmem:[%s0] ss:$16 sm:%s2]
    %vm4 = vcmask 228352
    %5 = vst.msk [vmem:[#allocation0] sm:$0x1] %vm4, %v3
    %s6 = scalar_lea.vmem [#allocation0], 31
    %7 = vst.msk [vmem:[%s6] sm:$0x2] %vm4, %v3
    %s8 = scalar_lea.vmem %s0, 9
    %s9 = smov 3
    %v10 = vld [vmem:[%s8] ss:$16 sm:%s9]
    %s11 = scalar_lea.vmem %s0, 9
    %s12 = smov 3
    %v13 = vld [vmem:[%s11] ss:$16 sm:%s12]
    %vm14 = vcmask 31744
    %v15 = vsel %vm14, %v13, %v10
    %16 = vrot.lane.b32.xlu0 %v15, 124
    %v17 = vpop.permute.xlu0 %16
    %vm18 = vcmask 195584
    %s19 = scalar_lea.vmem [#allocation0], 16
    %20 = vst.msk [vmem:[%s19] sm:$0x1] %vm18, %v17
    %s21 = scalar_lea.vmem [#allocation0], 47
    %22 = vst.msk [vmem:[%s21] sm:$0x2] %vm18, %v17
    %vm23 = vcmask 1048544
    %s24 = scalar_lea.vmem [#allocation0], 8
    %25 = vst.msk [vmem:[%s24] sm:$0x1] %vm23, %v17
    %s26 = scalar_lea.vmem [#allocation0], 39
    %27 = vst.msk [vmem:[%s26] sm:$0x2] %vm23, %v17
    %s28 = scalar_lea.vmem %s0, 4
    %s29 = smov 3
    %v30 = vld [vmem:[%s28] ss:$16 sm:%s29]
    %s31 = scalar_lea.vmem %s0, 4
    %s32 = smov 3
    %v33 = vld [vmem:[%s31] ss:$16 sm:%s32]
    %vm34 = vcmask 130048
    %v35 = vsel %vm34, %v33, %v30
    %36 = vrot.lane.b32.xlu0 %v35, 112
    %v37 = vpop.permute.xlu0 %36
    %vm38 = vcmask 97280
    %s39 = scalar_lea.vmem [#allocation0], 8
    %40 = vst.msk [vmem:[%s39] sm:$0x1] %vm38, %v37
    %s41 = scalar_lea.vmem [#allocation0], 39
    %42 = vst.msk [vmem:[%s41] sm:$0x2] %vm38, %v37
    %vm43 = vcmask 1048448
    %44 = vst.msk [vmem:[#allocation0] sm:$0x1] %vm43, %v37
    %s45 = scalar_lea.vmem [#allocation0], 31
    %46 = vst.msk [vmem:[%s45] sm:$0x2] %vm43, %v37
    %s47 = scalar_lea.vmem %s0, 13
    %s48 = smov 3
    %v49 = vld [vmem:[%s47] ss:$16 sm:%s48]
    %s50 = scalar_lea.vmem %s0, 13
    %s51 = smov 3
    %v52 = vld [vmem:[%s50] ss:$16 sm:%s51]
    %vm53 = vcmask 162816
    %v54 = vsel %vm53, %v52, %v49
    %55 = vrot.lane.b32.xlu0 %v54, 108
    %v56 = vpop.permute.xlu0 %55
    %vm57 = vcmask 64512
    %s58 = scalar_lea.vmem [#allocation0], 24
    %59 = vst.msk [vmem:[%s58] sm:$0x1] %vm57, %v56
    %s60 = scalar_lea.vmem [#allocation0], 55
    %61 = vst.msk [vmem:[%s60] sm:$0x2] %vm57, %v56
    %vm62 = vcmask 1048416
    %s63 = scalar_lea.vmem [#allocation0], 16
    %64 = vst.msk [vmem:[%s63] sm:$0x1] %vm62, %v56
    %s65 = scalar_lea.vmem [#allocation0], 47
    %66 = vst.msk [vmem:[%s65] sm:$0x2] %vm62, %v56
    %s67 = scalar_lea.vmem %s0, 8
    %s68 = smov 3
    %v69 = vld [vmem:[%s67] ss:$16 sm:%s68]
    %70 = vrot.lane.b32.xlu0 %v69, 96
    %v71 = vpop.permute.xlu0 %70
    %vm72 = vcmask 1015552
    %s73 = scalar_lea.vmem [#allocation0], 8
    %74 = vst.msk [vmem:[%s73] sm:$0x1] %vm72, %v71
    %s75 = scalar_lea.vmem [#allocation0], 39
    %76 = vst.msk [vmem:[%s75] sm:$0x2] %vm72, %v71
    %s77 = scalar_lea.vmem %s0, 3
    %s78 = smov 3
    %v79 = vld [vmem:[%s77] ss:$16 sm:%s78]
    %80 = vrot.lane.b32.xlu0 %v79, 84
    %v81 = vpop.permute.xlu0 %80
    %vm82 = vcmask 917152
    %83 = vst.msk [vmem:[#allocation0] sm:$0x1] %vm82, %v81
    %s84 = scalar_lea.vmem [#allocation0], 31
    %85 = vst.msk [vmem:[%s84] sm:$0x2] %vm82, %v81
    %s86 = scalar_lea.vmem %s0, 12
    %s87 = smov 3
    %v88 = vld [vmem:[%s86] ss:$16 sm:%s87]
    %89 = vrot.lane.b32.xlu0 %v88, 80
    %v90 = vpop.permute.xlu0 %89
    %vm91 = vcmask 884352
    %s92 = scalar_lea.vmem [#allocation0], 16
    %93 = vst.msk [vmem:[%s92] sm:$0x1] %vm91, %v90
    %s94 = scalar_lea.vmem [#allocation0], 47
    %95 = vst.msk [vmem:[%s94] sm:$0x2] %vm91, %v90
    %s96 = scalar_lea.vmem %s0, 7
    %s97 = smov 3
    %v98 = vld [vmem:[%s96] ss:$16 sm:%s97]
    %99 = vrot.lane.b32.xlu0 %v98, 68
    %v100 = vpop.permute.xlu0 %99
    %vm101 = vcmask 785952
    %s102 = scalar_lea.vmem [#allocation0], 8
    %103 = vst.msk [vmem:[%s102] sm:$0x1] %vm101, %v100
    %s104 = scalar_lea.vmem [#allocation0], 39
    %105 = vst.msk [vmem:[%s104] sm:$0x2] %vm101, %v100
    %s106 = scalar_lea.vmem %s0, 2
    %s107 = smov 3
    %v108 = vld [vmem:[%s106] ss:$16 sm:%s107]
    %109 = vrot.lane.b32.xlu0 %v108, 56
    %v110 = vpop.permute.xlu0 %109
    %vm111 = vcmask 687552
    %112 = vst.msk [vmem:[#allocation0] sm:$0x1] %vm111, %v110
    %s113 = scalar_lea.vmem [#allocation0], 31
    %114 = vst.msk [vmem:[%s113] sm:$0x2] %vm111, %v110
    %s115 = scalar_lea.vmem %s0, 11
    %s116 = smov 3
    %v117 = vld [vmem:[%s115] ss:$16 sm:%s116]
    %118 = vrot.lane.b32.xlu0 %v117, 52
    %v119 = vpop.permute.xlu0 %118
    %vm120 = vcmask 654752
    %s121 = scalar_lea.vmem [#allocation0], 16
    %122 = vst.msk [vmem:[%s121] sm:$0x1] %vm120, %v119
    %s123 = scalar_lea.vmem [#allocation0], 47
    %124 = vst.msk [vmem:[%s123] sm:$0x2] %vm120, %v119
    %s125 = scalar_lea.vmem %s0, 6
    %s126 = smov 3
    %v127 = vld [vmem:[%s125] ss:$16 sm:%s126]
    %128 = vrot.lane.b32.xlu0 %v127, 40
    %v129 = vpop.permute.xlu0 %128
    %vm130 = vcmask 556352
    %s131 = scalar_lea.vmem [#allocation0], 8
    %132 = vst.msk [vmem:[%s131] sm:$0x1] %vm130, %v129
    %s133 = scalar_lea.vmem [#allocation0], 39
    %134 = vst.msk [vmem:[%s133] sm:$0x2] %vm130, %v129
    %s135 = scalar_lea.vmem %s0, 1
    %s136 = smov 3
    %v137 = vld [vmem:[%s135] ss:$16 sm:%s136]
    %138 = vrot.lane.b32.xlu0 %v137, 28
    %v139 = vpop.permute.xlu0 %138
    %vm140 = vcmask 457952
    %141 = vst.msk [vmem:[#allocation0] sm:$0x1] %vm140, %v139
    %s142 = scalar_lea.vmem [#allocation0], 31
    %143 = vst.msk [vmem:[%s142] sm:$0x2] %vm140, %v139
    %s144 = scalar_lea.vmem %s0, 10
    %s145 = smov 3
    %v146 = vld [vmem:[%s144] ss:$16 sm:%s145]
    %147 = vrot.lane.b32.xlu0 %v146, 24
    %v148 = vpop.permute.xlu0 %147
    %vm149 = vcmask 425152
    %s150 = scalar_lea.vmem [#allocation0], 16
    %151 = vst.msk [vmem:[%s150] sm:$0x1] %vm149, %v148
    %s152 = scalar_lea.vmem [#allocation0], 47
    %153 = vst.msk [vmem:[%s152] sm:$0x2] %vm149, %v148
    %s154 = scalar_lea.vmem %s0, 5
    %s155 = smov 3
    %v156 = vld [vmem:[%s154] ss:$16 sm:%s155]
    %157 = vrot.lane.b32.xlu0 %v156, 12
    %v158 = vpop.permute.xlu0 %157
    %vm159 = vcmask 326752
    %s160 = scalar_lea.vmem [#allocation0], 8
    %161 = vst.msk [vmem:[%s160] sm:$0x1] %vm159, %v158
    %s162 = scalar_lea.vmem [#allocation0], 39
    %163 = vst.msk [vmem:[%s162] sm:$0x2] %vm159, %v158
    %s165 = ssub.s32 2, 1
    %v166 = vld [vmem:[#allocation0] sm:%s165]
    %s168 = ssub.s32 2, 1
    %169 = vst [vmem:[%s1] sm:%s168] %v166
    %s170 = scalar_lea.vmem [#allocation0], 8
    %v171 = vld [vmem:[%s170] sm:%s165]
    %s173 = ssub.s32 2, 1
    %s174 = scalar_lea.vmem %s1, 1
    %175 = vst [vmem:[%s174] sm:%s173] %v171
    %s176 = scalar_lea.vmem [#allocation0], 16
    %v177 = vld [vmem:[%s176] sm:%s165]
    %s179 = ssub.s32 2, 1
    %s180 = scalar_lea.vmem %s1, 2
    %181 = vst [vmem:[%s180] sm:%s179] %v177
    %s182 = scalar_lea.vmem [#allocation0], 24
    %v183 = vld [vmem:[%s182] sm:%s165]
    %s185 = ssub.s32 2, 1
    %s186 = scalar_lea.vmem %s1, 3
    %187 = vst [vmem:[%s186] sm:%s185] %v183
    %s188 = scalar_lea.vmem [#allocation0], 32
    %v189 = vld [vmem:[%s188] sm:%s165]
    %s191 = ssub.s32 2, 1
    %s192 = scalar_lea.vmem %s1, 4
    %193 = vst [vmem:[%s192] sm:%s191] %v189
    %s194 = scalar_lea.vmem [#allocation0], 40
    %v195 = vld [vmem:[%s194] sm:%s165]
    %s197 = ssub.s32 2, 1
    %s198 = scalar_lea.vmem %s1, 5
    %199 = vst [vmem:[%s198] sm:%s197] %v195
    %s200 = scalar_lea.vmem [#allocation0], 48
    %v201 = vld [vmem:[%s200] sm:%s165]
    %s203 = ssub.s32 2, 1
    %s204 = scalar_lea.vmem %s1, 6
    %205 = vst [vmem:[%s204] sm:%s203] %v201
    %s206 = scalar_lea.vmem [#allocation0], 56
    %v207 = vld [vmem:[%s206] sm:%s165]
    %s209 = ssub.s32 2, 1
    %s210 = scalar_lea.vmem %s1, 7
    %211 = vst [vmem:[%s210] sm:%s209] %v207

// kernel: conv2d_pallas.1
$region0: #{conv2d_pallas.1}
  #allocation0 [shape = 'u32[]', space=smem, size = 0x4, offset = 0x4, fixed_abs, tag = 'smem constant byte address 0x4 - core index']
  #allocation1 [shape = 'u32[72,128]{1,0:T(1,128)}', space=vmem, size = 0x9000, scoped, tag = 'internal scratch']
  %s0 = inlined_call_operand.vmem [shape: f32[64,45], index: 0, kind: input, shape index: {}]
  %s1 = inlined_call_operand.vmem [shape: f32[2,45,392], index: 1, kind: input, shape index: {}]
  %s2 = inlined_call_operand.vmem [shape: f32[2,64,392], index: 2, kind: output, shape index: {}]
  %s3 = sld [smem:[#allocation0]]
  $region41: #{conv2d_pallas.1} parent=0
    _
  %s5 = ssub.s32 1, %s3
  %s6 = scalar_select 0, %s5, %s3
  loop: start=0, step=1, limit=4
  $region2: #{conv2d_pallas.1} parent=0 // loop_pre_header
    _
  $region3: #{conv2d_pallas.1} parent=0 // loop_header
    %s8 = sphi 0, %s12
    %p9 = scmp.ge.s32.totalorder %s8, 4
    %s16 = sphi 0, %s16
    %s18 = sphi 0, %s16
    %s19 = sphi 0, %s18
    %s33 = sphi 0, %s19
    %s39 = sphi 0, %s41
    %s42 = sphi 0, %s39
    %s43 = sphi 0, %s42
    %s59 = sphi 0, %s43
    %s65 = sphi 0, %s67
    %s68 = sphi 0, %s65
    %s69 = sphi 0, %s68
    %s85 = sphi 0, %s69
  $region4: #{conv2d_pallas.1} parent=0 // loop_header_branch
    %11 = sbr.rel (%p9) target = $region8
  $region5: #{conv2d_pallas.1} parent=0 // loop_body
    %s13 = ssub.s32 %s8, 1
    %s14 = ssub.s32 %s8, 2
    %s15 = sadd.s32 %s8, 1
    %s17 = sadd.s32 %s16, 1
    %p20 = scmp.eq.s32.totalorder %s8, 1
    %p21 = scmp.ne.s32.totalorder %s16, %s18
    %p22 = scmp.eq.s32.totalorder %s8, 0
    %p23 = por %p21, %p22
    %p24 = scmp.ne.s32.totalorder %s16, %s18
    %p25 = scmp.eq.s32.totalorder %s13, 1
    %p26 = por %p24, %p25
    %p27 = scmp.ne.s32.totalorder %s18, %s19
    %p28 = scmp.eq.s32.totalorder %s13, 0
    %p29 = por %p27, %p28
    %p30 = scmp.ne.s32.totalorder %s18, %s19
    %p31 = scmp.eq.s32.totalorder %s14, 1
    %p32 = por %p30, %p31
    %p34 = scmp.ne.s32.totalorder %s19, %s33
    %p35 = scmp.eq.s32.totalorder %s14, 0
    %p36 = por %p34, %p35
    %s37 = ssub.s32 %s8, %s15
    %p38 = scmp.eq.s32.totalorder %s37, 0
    %s40 = sadd.s32 %s39, 1
    %s41 = scalar_select %p38, %s39, %s40
    %p44 = pneg %p38
    %p45 = scmp.eq.s32.totalorder %s8, 1
    %p46 = por %p44, %p45
    %p47 = scmp.ne.s32.totalorder %s39, %s42
    %p48 = scmp.eq.s32.totalorder %s8, 0
    %p49 = por %p47, %p48
    %p50 = scmp.ne.s32.totalorder %s39, %s42
    %p51 = scmp.eq.s32.totalorder %s13, 1
    %p52 = por %p50, %p51
    %p53 = scmp.ne.s32.totalorder %s42, %s43
    %p54 = scmp.eq.s32.totalorder %s13, 0
    %p55 = por %p53, %p54
    %p56 = scmp.ne.s32.totalorder %s42, %s43
    %p57 = scmp.eq.s32.totalorder %s14, 1
    %p58 = por %p56, %p57
    %p60 = scmp.ne.s32.totalorder %s43, %s59
    %p61 = scmp.eq.s32.totalorder %s14, 0
    %p62 = por %p60, %p61
    %s63 = ssub.s32 %s8, %s15
    %p64 = scmp.eq.s32.totalorder %s63, 0
    %s66 = sadd.s32 %s65, 1
    %s67 = scalar_select %p64, %s65, %s66
    %p70 = pneg %p64
    %p71 = scmp.eq.s32.totalorder %s8, 1
    %p72 = por %p70, %p71
    %p73 = scmp.ne.s32.totalorder %s65, %s68
    %p74 = scmp.eq.s32.totalorder %s8, 0
    %p75 = por %p73, %p74
    %p76 = scmp.ne.s32.totalorder %s65, %s68
    %p77 = scmp.eq.s32.totalorder %s13, 1
    %p78 = por %p76, %p77
    %p79 = scmp.ne.s32.totalorder %s68, %s69
    %p80 = scmp.eq.s32.totalorder %s13, 0
    %p81 = por %p79, %p80
    %p82 = scmp.ne.s32.totalorder %s68, %s69
    %p83 = scmp.eq.s32.totalorder %s14, 1
    %p84 = por %p82, %p83
    %p86 = scmp.ne.s32.totalorder %s69, %s85
    %p87 = scmp.eq.s32.totalorder %s14, 0
    %p88 = por %p86, %p87
    %p89 = scmp.le.s32.totalorder 1, %s8
    %p90 = scmp.lt.s32.totalorder %s8, 3
    %p91 = pnand %p89, %p90
    %p92 = pneg %p91
    // Predicated region
    $region9: #{conv2d_pallas.1} parent=5 // pred_check
      _
    $region10: #{conv2d_pallas.1} parent=5 // pred_check_branch
      %94 = sbr.rel (%p91) target = $region12
    $region11: #{conv2d_pallas.1} parent=5 // pred_region
      %s95 = ssub.s32 %s8, 1
      // Predicated region
      $region13: #{conv2d_pallas.1} parent=11 // pred_check
        %p96 = pneg %p29
      $region14: #{conv2d_pallas.1} parent=11 // pred_check_branch
        %98 = sbr.rel (%p96) target = $region16
      $region15: #{conv2d_pallas.1} parent=11 // pred_region
        _
      $region16: #{conv2d_pallas.1} parent=11 // pred_fallthru
        _
    $region12: #{conv2d_pallas.1} parent=5 // pred_fallthru
      _
    %p99 = scmp.lt.s32.totalorder %s8, 2
    // Predicated region
    $region17: #{conv2d_pallas.1} parent=5 // pred_check
      %p100 = pneg %p99
    $region18: #{conv2d_pallas.1} parent=5 // pred_check_branch
      %102 = sbr.rel (%p100) target = $region20
    $region19: #{conv2d_pallas.1} parent=5 // pred_region
      // Predicated region
      $region21: #{conv2d_pallas.1} parent=19 // pred_check
        %p103 = pneg %p49
      $region22: #{conv2d_pallas.1} parent=19 // pred_check_branch
        %105 = sbr.rel (%p103) target = $region24
      $region23: #{conv2d_pallas.1} parent=19 // pred_region
        %p106 = scmp.lt.s32.totalorder %s8, 1
        %s107 = scalar_select %p106, %s8, 1
        %s108 = smul.addr %s107, 24
        %s109 = smul.addr %s108, 8
        %s110 = scalar_lea.vmem %s1, %s109
      $region24: #{conv2d_pallas.1} parent=19 // pred_fallthru
        _
    $region20: #{conv2d_pallas.1} parent=5 // pred_fallthru
      _
    %p111 = scmp.le.s32.totalorder 1, %s8
    %p112 = scmp.lt.s32.totalorder %s8, 3
    %p113 = pnand %p111, %p112
    %p114 = pneg %p113
    // Predicated region
    $region25: #{conv2d_pallas.1} parent=5 // pred_check
      _
    $region26: #{conv2d_pallas.1} parent=5 // pred_check_branch
      %116 = sbr.rel (%p113) target = $region28
    $region27: #{conv2d_pallas.1} parent=5 // pred_region
      %s117 = ssub.s32 %s8, 1
      %p118 = pneg %p29
      %p119 = pneg %p26
      %p120 = scmp.lt.s32.totalorder %s13, 1
      %s121 = scalar_select %p120, %s13, 1
      %s122 = smul.addr %s121, 24
      %s123 = smul.addr %s122, 8
      %s124 = scalar_lea.vmem %s1, %s123
      %p125 = pneg %p55
      %p126 = pneg %p52
      %p127 = pneg %p81
      %p128 = pneg %p78
      %p129 = scmp.lt.s32.totalorder %s13, 1
      %s130 = scalar_select %p129, %s13, 1
      %s131 = smul.addr %s130, 32
      %s132 = smul.addr %s131, 8
      %s133 = scalar_lea.vmem %s2, %s132
      %p134 = scmp.lt.s32.totalorder %s13, 1
      %s135 = scalar_select %p134, %s13, 1
      %s136 = smul.addr %s135, 24
      %s137 = smul.addr %s136, 8
      %s138 = scalar_lea.vmem %s1, %s137
      %p139 = scmp.lt.s32.totalorder %s13, 1
      %s140 = scalar_select %p139, %s13, 1
      %s141 = smul.addr %s140, 32
      %s142 = smul.addr %s141, 8
      %s143 = scalar_lea.vmem %s2, %s142
      %v144 = vld [vmem:[%s0] sm:$0xff]
      %v145 = vld [vmem:[%s0 + $0x8] sm:$0xff]
      %v146 = vld [vmem:[%s0 + $0x10] sm:$0xff]
      %v147 = vld [vmem:[%s0 + $0x18] sm:$0xff]
      %v148 = vld [vmem:[%s0 + $0x20] sm:$0xff]
      %v149 = vld [vmem:[%s0 + $0x28] sm:$0xff]
      %v150 = vld [vmem:[%s0 + $0x30] sm:$0xff]
      %v151 = vld [vmem:[%s0 + $0x38] sm:$0xff]
      %v152 = vld [vmem:[%s138] sm:$0xff]
      %v153 = vld [vmem:[%s138 + $0x8] sm:$0xff]
      %v154 = vld [vmem:[%s138 + $0x10] sm:$0xff]
      %v155 = vld [vmem:[%s138 + $0x18] sm:$0xff]
      %v156 = vld [vmem:[%s138 + $0x20] sm:$0xff]
      %v157 = vld [vmem:[%s138 + $0x28] sm:$0xff]
      %v158 = vld [vmem:[%s138 + $0x30] sm:$0xff]
      %v159 = vld [vmem:[%s138 + $0x38] sm:$0xff]
      %v160 = vld [vmem:[%s138 + $0x40] sm:$0xff]
      %v161 = vld [vmem:[%s138 + $0x48] sm:$0xff]
      %v162 = vld [vmem:[%s138 + $0x50] sm:$0xff]
      %v163 = vld [vmem:[%s138 + $0x58] sm:$0xff]
      %v164 = vld [vmem:[%s138 + $0x60] sm:$0xff]
      %v165 = vld [vmem:[%s138 + $0x68] sm:$0xff]
      %v166 = vld [vmem:[%s138 + $0x70] sm:$0xff]
      %v167 = vld [vmem:[%s138 + $0x78] sm:$0xff]
      %v168 = vld [vmem:[%s138 + $0x80] sm:$0xff]
      %v169 = vld [vmem:[%s138 + $0x88] sm:$0xff]
      %v170 = vld [vmem:[%s138 + $0x90] sm:$0xff]
      %v171 = vld [vmem:[%s138 + $0x98] sm:$0xff]
      %v172 = vld [vmem:[%s138 + $0xa0] sm:$0x1f]
      %v173 = vld [vmem:[%s138 + $0xa8] sm:$0x1f]
      %v174 = vld [vmem:[%s138 + $0xb0] sm:$0x1f]
      %v175 = vld [vmem:[%s138 + $0xb8] sm:$0x1f]
      %vm176 = vcmask 367616
      %v178 = vsel %vm176, %v144, 0
      %v181 = vsel %vm176, %v145, 0
      %v184 = vsel %vm176, %v146, 0
      %v187 = vsel %vm176, %v147, 0
      %v190 = vsel %vm176, %v148, 0
      %v193 = vsel %vm176, %v149, 0
      %v196 = vsel %vm176, %v150, 0
      %v199 = vsel %vm176, %v151, 0
      %vm201 = vcmask 1044480
      %v203 = vsel %vm201, %v172, 0
      %v206 = vsel %vm201, %v173, 0
      %v209 = vsel %vm201, %v174, 0
      %v212 = vsel %vm201, %v175, 0
      %214 = vmatpush.msra.mxu0 0.0
      %215 = vmatpush.msra.mxu0 0.0
      %216 = vmatpush.msra.mxu0 0.0
      %217 = vmatpush.msra.mxu0 0.0
      %218 = vmatpush.msra.mxu0 0.0
      %219 = vmatpush.msra.mxu0 0.0
      %220 = vmatpush.msra.mxu0 0.0
      %221 = vmatpush.msra.mxu0 0.0
      %222 = vmatpush.msra.mxu0 0.0
      %223 = vmatpush.msra.mxu0 0.0
      %224 = vmatpush.msra.mxu0 %v203
      %225 = vmatpush.msra.mxu0 %v168
      %226 = vmatpush.msra.mxu0 %v164
      %227 = vmatpush.msra.mxu0 %v160
      %228 = vmatpush.msra.mxu0 %v156
      %229 = vmatpush.msra.mxu0 %v152
      %230 = vmatmul.f32.gmra.mxu0 %v178
      %v231 = vpop.f32.mrf.mxu0
      %v232 = vadd.f32 0.0, %v231
      %233 = vmatmul.f32.gmra.mxu0 %v181
      %v234 = vpop.f32.mrf.mxu0
      %v235 = vadd.f32 0.0, %v234
      %236 = vmatmul.f32.gmra.mxu0 %v184
      %v237 = vpop.f32.mrf.mxu0
      %v238 = vadd.f32 0.0, %v237
      %239 = vmatmul.f32.gmra.mxu0 %v187
      %v240 = vpop.f32.mrf.mxu0
      %v241 = vadd.f32 0.0, %v240
      %242 = vmatmul.f32.gmra.mxu0 %v190
      %v243 = vpop.f32.mrf.mxu0
      %v244 = vadd.f32 0.0, %v243
      %245 = vmatmul.f32.gmra.mxu0 %v193
      %v246 = vpop.f32.mrf.mxu0
      %v247 = vadd.f32 0.0, %v246
      %248 = vmatmul.f32.gmra.mxu0 %v196
      %v249 = vpop.f32.mrf.mxu0
      %v250 = vadd.f32 0.0, %v249
      %251 = vmatmul.f32.gmra.mxu0 %v199
      %v252 = vpop.f32.mrf.mxu0
      %v253 = vadd.f32 0.0, %v252
      %254 = vdwg.mxu0
      %255 = vmatpush.msra.mxu0 0.0
      %256 = vmatpush.msra.mxu0 0.0
      %257 = vmatpush.msra.mxu0 0.0
      %258 = vmatpush.msra.mxu0 0.0
      %259 = vmatpush.msra.mxu0 0.0
      %260 = vmatpush.msra.mxu0 0.0
      %261 = vmatpush.msra.mxu0 0.0
      %262 = vmatpush.msra.mxu0 0.0
      %263 = vmatpush.msra.mxu0 0.0
      %264 = vmatpush.msra.mxu0 0.0
      %265 = vmatpush.msra.mxu0 %v206
      %266 = vmatpush.msra.mxu0 %v169
      %267 = vmatpush.msra.mxu0 %v165
      %268 = vmatpush.msra.mxu0 %v161
      %269 = vmatpush.msra.mxu0 %v157
      %270 = vmatpush.msra.mxu0 %v153
      %271 = vmatmul.f32.gmra.mxu0 %v178
      %v272 = vpop.f32.mrf.mxu0
      %v273 = vadd.f32 0.0, %v272
      %274 = vmatmul.f32.gmra.mxu0 %v181
      %v275 = vpop.f32.mrf.mxu0
      %v276 = vadd.f32 0.0, %v275
      %277 = vmatmul.f32.gmra.mxu0 %v184
      %v278 = vpop.f32.mrf.mxu0
      %v279 = vadd.f32 0.0, %v278
      %280 = vmatmul.f32.gmra.mxu0 %v187
      %v281 = vpop.f32.mrf.mxu0
      %v282 = vadd.f32 0.0, %v281
      %283 = vmatmul.f32.gmra.mxu0 %v190
      %v284 = vpop.f32.mrf.mxu0
      %v285 = vadd.f32 0.0, %v284
      %286 = vmatmul.f32.gmra.mxu0 %v193
      %v287 = vpop.f32.mrf.mxu0
      %v288 = vadd.f32 0.0, %v287
      %289 = vmatmul.f32.gmra.mxu0 %v196
      %v290 = vpop.f32.mrf.mxu0
      %v291 = vadd.f32 0.0, %v290
      %292 = vmatmul.f32.gmra.mxu0 %v199
      %v293 = vpop.f32.mrf.mxu0
      %v294 = vadd.f32 0.0, %v293
      %295 = vdwg.mxu0
      %296 = vmatpush.msra.mxu0 0.0
      %297 = vmatpush.msra.mxu0 0.0
      %298 = vmatpush.msra.mxu0 0.0
      %299 = vmatpush.msra.mxu0 0.0
      %300 = vmatpush.msra.mxu0 0.0
      %301 = vmatpush.msra.mxu0 0.0
      %302 = vmatpush.msra.mxu0 0.0
      %303 = vmatpush.msra.mxu0 0.0
      %304 = vmatpush.msra.mxu0 0.0
      %305 = vmatpush.msra.mxu0 0.0
      %306 = vmatpush.msra.mxu0 %v209
      %307 = vmatpush.msra.mxu0 %v170
      %308 = vmatpush.msra.mxu0 %v166
      %309 = vmatpush.msra.mxu0 %v162
      %310 = vmatpush.msra.mxu0 %v158
      %311 = vmatpush.msra.mxu0 %v154
      %312 = vmatmul.f32.gmra.mxu0 %v178
      %v313 = vpop.f32.mrf.mxu0
      %v314 = vadd.f32 0.0, %v313
      %315 = vmatmul.f32.gmra.mxu0 %v181
      %v316 = vpop.f32.mrf.mxu0
      %v317 = vadd.f32 0.0, %v316
      %318 = vmatmul.f32.gmra.mxu0 %v184
      %v319 = vpop.f32.mrf.mxu0
      %v320 = vadd.f32 0.0, %v319
      %321 = vmatmul.f32.gmra.mxu0 %v187
      %v322 = vpop.f32.mrf.mxu0
      %v323 = vadd.f32 0.0, %v322
      %324 = vmatmul.f32.gmra.mxu0 %v190
      %v325 = vpop.f32.mrf.mxu0
      %v326 = vadd.f32 0.0, %v325
      %327 = vmatmul.f32.gmra.mxu0 %v193
      %v328 = vpop.f32.mrf.mxu0
      %v329 = vadd.f32 0.0, %v328
      %330 = vmatmul.f32.gmra.mxu0 %v196
      %v331 = vpop.f32.mrf.mxu0
      %v332 = vadd.f32 0.0, %v331
      %333 = vmatmul.f32.gmra.mxu0 %v199
      %v334 = vpop.f32.mrf.mxu0
      %v335 = vadd.f32 0.0, %v334
      %336 = vdwg.mxu0
      %337 = vmatpush.msra.mxu0 0.0
      %338 = vmatpush.msra.mxu0 0.0
      %339 = vmatpush.msra.mxu0 0.0
      %340 = vmatpush.msra.mxu0 0.0
      %341 = vmatpush.msra.mxu0 0.0
      %342 = vmatpush.msra.mxu0 0.0
      %343 = vmatpush.msra.mxu0 0.0
      %344 = vmatpush.msra.mxu0 0.0
      %345 = vmatpush.msra.mxu0 0.0
      %346 = vmatpush.msra.mxu0 0.0
      %347 = vmatpush.msra.mxu0 %v212
      %348 = vmatpush.msra.mxu0 %v171
      %349 = vmatpush.msra.mxu0 %v167
      %350 = vmatpush.msra.mxu0 %v163
      %351 = vmatpush.msra.mxu0 %v159
      %352 = vmatpush.msra.mxu0 %v155
      %353 = vmatmul.f32.gmra.mxu0 %v178
      %v354 = vpop.f32.mrf.mxu0
      %v355 = vadd.f32 0.0, %v354
      %356 = vmatmul.f32.gmra.mxu0 %v181
      %v357 = vpop.f32.mrf.mxu0
      %v358 = vadd.f32 0.0, %v357
      %359 = vmatmul.f32.gmra.mxu0 %v184
      %v360 = vpop.f32.mrf.mxu0
      %v361 = vadd.f32 0.0, %v360
      %362 = vmatmul.f32.gmra.mxu0 %v187
      %v363 = vpop.f32.mrf.mxu0
      %v364 = vadd.f32 0.0, %v363
      %365 = vmatmul.f32.gmra.mxu0 %v190
      %v366 = vpop.f32.mrf.mxu0
      %v367 = vadd.f32 0.0, %v366
      %368 = vmatmul.f32.gmra.mxu0 %v193
      %v369 = vpop.f32.mrf.mxu0
      %v370 = vadd.f32 0.0, %v369
      %371 = vmatmul.f32.gmra.mxu0 %v196
      %v372 = vpop.f32.mrf.mxu0
      %v373 = vadd.f32 0.0, %v372
      %374 = vmatmul.f32.gmra.mxu0 %v199
      %v375 = vpop.f32.mrf.mxu0
      %v376 = vadd.f32 0.0, %v375
      %377 = vdwg.mxu0
      %378 = vst [vmem:[%s143] sm:$0xff] %v232
      %379 = vst [vmem:[%s143 + $0x8] sm:$0xff] %v273
      %380 = vst [vmem:[%s143 + $0x10] sm:$0xff] %v314
      %vm381 = vcmask 64512
      %382 = vst.msk [vmem:[%s143 + $0x18] sm:$0xff] %vm381, %v355
      %383 = vst [vmem:[%s143 + $0x20] sm:$0xff] %v235
      %384 = vst [vmem:[%s143 + $0x28] sm:$0xff] %v276
      %385 = vst [vmem:[%s143 + $0x30] sm:$0xff] %v317
      %386 = vst.msk [vmem:[%s143 + $0x38] sm:$0xff] %vm381, %v358
      %387 = vst [vmem:[%s143 + $0x40] sm:$0xff] %v238
      %388 = vst [vmem:[%s143 + $0x48] sm:$0xff] %v279
      %389 = vst [vmem:[%s143 + $0x50] sm:$0xff] %v320
      %390 = vst.msk [vmem:[%s143 + $0x58] sm:$0xff] %vm381, %v361
      %391 = vst [vmem:[%s143 + $0x60] sm:$0xff] %v241
      %392 = vst [vmem:[%s143 + $0x68] sm:$0xff] %v282
      %393 = vst [vmem:[%s143 + $0x70] sm:$0xff] %v323
      %394 = vst.msk [vmem:[%s143 + $0x78] sm:$0xff] %vm381, %v364
      %395 = vst [vmem:[%s143 + $0x80] sm:$0xff] %v244
      %396 = vst [vmem:[%s143 + $0x88] sm:$0xff] %v285
      %397 = vst [vmem:[%s143 + $0x90] sm:$0xff] %v326
      %398 = vst.msk [vmem:[%s143 + $0x98] sm:$0xff] %vm381, %v367
      %399 = vst [vmem:[%s143 + $0xa0] sm:$0xff] %v247
      %400 = vst [vmem:[%s143 + $0xa8] sm:$0xff] %v288
      %401 = vst [vmem:[%s143 + $0xb0] sm:$0xff] %v329
      %402 = vst.msk [vmem:[%s143 + $0xb8] sm:$0xff] %vm381, %v370
      %403 = vst [vmem:[%s143 + $0xc0] sm:$0xff] %v250
      %404 = vst [vmem:[%s143 + $0xc8] sm:$0xff] %v291
      %405 = vst [vmem:[%s143 + $0xd0] sm:$0xff] %v332
      %406 = vst.msk [vmem:[%s143 + $0xd8] sm:$0xff] %vm381, %v373
      %407 = vst [vmem:[%s143 + $0xe0] sm:$0xff] %v253
      %408 = vst [vmem:[%s143 + $0xe8] sm:$0xff] %v294
      %409 = vst [vmem:[%s143 + $0xf0] sm:$0xff] %v335
      %410 = vst.msk [vmem:[%s143 + $0xf8] sm:$0xff] %vm381, %v376
      %p411 = scmp.lt.s32.totalorder %s13, 1
      %s412 = scalar_select %p411, %s13, 1
      %s413 = smul.addr %s412, 32
      %s414 = smul.addr %s413, 8
      %s415 = scalar_lea.vmem %s2, %s414
      // Predicated region
      $region29: #{conv2d_pallas.1} parent=27 // pred_check
        %p416 = pneg %p78
      $region30: #{conv2d_pallas.1} parent=27 // pred_check_branch
        %418 = sbr.rel (%p416) target = $region32
      $region31: #{conv2d_pallas.1} parent=27 // pred_region
        _
      $region32: #{conv2d_pallas.1} parent=27 // pred_fallthru
        _
    $region28: #{conv2d_pallas.1} parent=5 // pred_fallthru
      _
    %p419 = scmp.le.s32.totalorder 2, %s8
    // Predicated region
    $region33: #{conv2d_pallas.1} parent=5 // pred_check
      %p420 = pneg %p419
    $region34: #{conv2d_pallas.1} parent=5 // pred_check_branch
      %422 = sbr.rel (%p420) target = $region36
    $region35: #{conv2d_pallas.1} parent=5 // pred_region
      %s423 = ssub.s32 %s8, 2
      // Predicated region
      $region37: #{conv2d_pallas.1} parent=35 // pred_check
        %p424 = pneg %p84
      $region38: #{conv2d_pallas.1} parent=35 // pred_check_branch
        %426 = sbr.rel (%p424) target = $region40
      $region39: #{conv2d_pallas.1} parent=35 // pred_region
        %p427 = scmp.lt.s32.totalorder %s14, 1
        %s428 = scalar_select %p427, %s14, 1
        %s429 = smul.addr %s428, 32
        %s430 = smul.addr %s429, 8
        %s431 = scalar_lea.vmem %s2, %s430
      $region40: #{conv2d_pallas.1} parent=35 // pred_fallthru
        _
    $region36: #{conv2d_pallas.1} parent=5 // pred_fallthru
      _
  $region6: #{conv2d_pallas.1} parent=0 // loop_footer
    %s12 = sadd.s32 1, %s8
  $region7: #{conv2d_pallas.1} parent=0 // loop_footer_branch
    %7 = sbr.rel target = $region3
  $region8: #{conv2d_pallas.1} parent=0 // loop_exit
    _

</llo_original>
